<compile_context>
chip_gen: v5e
topology: v5e:2x2
jax: 0.10.0
libtpu: 0.0.40
codegen_flags: <defaults>
</compile_context>

<pallas_src>
import functools

import jax
import jax.numpy as jnp
from jax.experimental import pallas as pl
from jax.experimental.pallas import tpu as pltpu

BN_EPS = 1e-5

# 512-lane tiles: big enough to approach the HBM roofline (>=512 reached ~85% in
# measured tiled data), small enough that double-buffered (C_in + C_out) x 512 f32
# tiles stay far under scoped-VMEM defaults on v5e (16 MiB) / v6e / v7x (32 MiB)
# even for realistic channel counts.
MAX_TILE_N = 512


def _pick_tile_n(n):
    if n <= MAX_TILE_N:
        return n                      # single block covering full N (always legal)
    for t in (512, 256, 128):
        if n % t == 0:
            return t                  # even, 128-aligned divisor -> no padding
    return MAX_TILE_N                 # ragged tail: pass 1 masks, pass 2 pad-stores are dropped


def _stats_kernel(xp_ref, xi_ref, wp_ref, wi_ref, stats_ref, *, n_total, tile_n):
    """Accumulate per-channel sum / sum-of-squares of y = Wp@xp + Wi@xi."""
    n_idx = pl.program_id(1)

    @pl.when(n_idx == 0)
    def _init():
        stats_ref[...] = jnp.zeros_like(stats_ref)

    xp = xp_ref[0].astype(jnp.float32)                 # (Cp, T)
    xi = xi_ref[0].astype(jnp.float32)                 # (Ci, T)
    y = (jnp.dot(wp_ref[...].astype(jnp.float32), xp, preferred_element_type=jnp.float32)
         + jnp.dot(wi_ref[...].astype(jnp.float32), xi, preferred_element_type=jnp.float32))

    if n_total % tile_n:                               # trace-time branch: mask ragged last tile
        lane = jax.lax.broadcasted_iota(jnp.int32, y.shape, 1)
        y = jnp.where(lane + n_idx * tile_n < n_total, y, 0.0)

    s = jnp.sum(y, axis=1, keepdims=True)              # (C_out, 1)
    sq = jnp.sum(y * y, axis=1, keepdims=True)         # (C_out, 1)
    stats_ref[0, :, 0:1] += s                          # accumulator resident across N axis
    stats_ref[0, :, 1:2] += sq


def _apply_kernel(xp_ref, xi_ref, wp_ref, wi_ref, scale_ref, shift_ref, o_ref):
    """out = relu((Wp@xp + Wi@xi) * scale + shift), written lane-dense in NCW."""
    xp = xp_ref[0].astype(jnp.float32)
    xi = xi_ref[0].astype(jnp.float32)
    y = (jnp.dot(wp_ref[...].astype(jnp.float32), xp, preferred_element_type=jnp.float32)
         + jnp.dot(wi_ref[...].astype(jnp.float32), xi, preferred_element_type=jnp.float32))
    # Padded lanes of a ragged final tile are dropped by Pallas on writeback.
    o_ref[0] = jnp.maximum(y * scale_ref[...] + shift_ref[...], 0.0).astype(o_ref.dtype)


def fusion_conv(point_features, img_features, conv_w, conv_b, bn_gamma, bn_beta):
    """point_features: (B, Cp, N), img_features: (B, Ci, N) -> (B, C_out, N) (NCW)."""
    B, Cp, N = point_features.shape
    Bi, Ci, Ni = img_features.shape
    assert (B, N) == (Bi, Ni)
    C_out, C_in = conv_w.shape
    assert C_in == Cp + Ci
    del conv_b  # Conv bias is exactly cancelled by the BN mean subtraction.

    tile_n = _pick_tile_n(N)
    n_tiles = pl.cdiv(N, tile_n)
    grid = (B, n_tiles)

    # Split the 1x1-conv weight so the kernel never needs a channel concat.
    wp = conv_w[:, :Cp]
    wi = conv_w[:, Cp:]

    xp_spec = pl.BlockSpec((1, Cp, tile_n), lambda b, n: (b, 0, n))
    xi_spec = pl.BlockSpec((1, Ci, tile_n), lambda b, n: (b, 0, n))
    # Parameters: constant index map -> DMA'd once, stay VMEM-resident across steps.
    wp_spec = pl.BlockSpec((C_out, Cp), lambda b, n: (0, 0))
    wi_spec = pl.BlockSpec((C_out, Ci), lambda b, n: (0, 0))
    vec_spec = pl.BlockSpec((C_out, 1), lambda b, n: (0, 0))

    # ---- pass 1: per-channel sum / sum-of-squares of the conv output ----------
    stats = pl.pallas_call(
        functools.partial(_stats_kernel, n_total=N, tile_n=tile_n),
        out_shape=jax.ShapeDtypeStruct((B, C_out, 2), jnp.float32),
        grid=grid,
        in_specs=[xp_spec, xi_spec, wp_spec, wi_spec],
        out_specs=pl.BlockSpec((1, C_out, 2), lambda b, n: (b, 0, 0)),
        compiler_params=pltpu.CompilerParams(
            dimension_semantics=("parallel", "arbitrary")),
    )(point_features, img_features, wp, wi)

    # ---- tiny glue in plain JAX (O(C_out) work) --------------------------------
    m = jnp.float32(B * N)
    sum_y = jnp.sum(stats[:, :, 0], axis=0)
    sum_yy = jnp.sum(stats[:, :, 1], axis=0)
    mean = sum_y / m
    var = jnp.maximum(sum_yy / m - mean * mean, 0.0)   # biased (training-mode) variance
    scale = bn_gamma.astype(jnp.float32) * jax.lax.rsqrt(var + BN_EPS)
    shift = bn_beta.astype(jnp.float32) - mean * scale
    scale = scale.reshape(C_out, 1)
    shift = shift.reshape(C_out, 1)

    # ---- pass 2: relu(y * scale + shift), fully tile-parallel ------------------
    out = pl.pallas_call(
        _apply_kernel,
        out_shape=jax.ShapeDtypeStruct((B, C_out, N), point_features.dtype),
        grid=grid,
        in_specs=[xp_spec, xi_spec, wp_spec, wi_spec, vec_spec, vec_spec],
        out_specs=pl.BlockSpec((1, C_out, tile_n), lambda b, n: (b, 0, n)),
        compiler_params=pltpu.CompilerParams(
            dimension_semantics=("parallel", "parallel")),
    )(point_features, img_features, wp, wi, scale, shift)
    return out


def reference(point_features, img_features, conv_w, conv_b, bn_gamma, bn_beta):
    fused = jnp.concatenate([point_features, img_features], axis=1)      # (B, C_in, N)
    y = jnp.einsum("oc,bcn->bon", conv_w, fused) + conv_b[None, :, None]
    mean = jnp.mean(y, axis=(0, 2), keepdims=True)
    var = jnp.mean((y - mean) ** 2, axis=(0, 2), keepdims=True)
    y_hat = (y - mean) / jnp.sqrt(var + BN_EPS)
    out = y_hat * bn_gamma[None, :, None] + bn_beta[None, :, None]
    return jnp.maximum(out, 0.0)


if __name__ == "__main__":
    key = jax.random.PRNGKey(0)
    k1, k2, k3, k4, k5, k6 = jax.random.split(key, 6)

    # Small shapes; N chosen so the grid has 2 N-tiles of 512 (exercises tiling
    # + cross-tile stat accumulation) while staying lane-aligned.
    B, Cp, Ci, N = 2, 4, 4, 1024
    inplanes, outplanes = Cp + Ci, 8

    point_features = jax.random.normal(k1, (B, Cp, N), dtype=jnp.float32)
    img_features = jax.random.normal(k2, (B, Ci, N), dtype=jnp.float32)

    # Conv1d weight is (out, in, 1) in torch; kernel size 1 so we keep it (out, in).
    conv_w = 0.1 * jax.random.normal(k3, (outplanes, inplanes), dtype=jnp.float32)
    conv_b = 0.05 * jax.random.normal(k4, (outplanes,), dtype=jnp.float32)
    bn_gamma = 1.0 + 0.1 * jax.random.normal(k5, (outplanes,), dtype=jnp.float32)
    bn_beta = 0.1 * jax.random.normal(k6, (outplanes,), dtype=jnp.float32)

    out = jax.block_until_ready(
        fusion_conv(point_features, img_features, conv_w, conv_b, bn_gamma, bn_beta))

    ref = reference(point_features, img_features, conv_w, conv_b, bn_gamma, bn_beta)
    assert out.shape == (B, outplanes, N), out.shape
    max_err = float(jnp.max(jnp.abs(out - ref)))
    assert jnp.allclose(out, ref, atol=1e-4, rtol=1e-4), max_err

    print("KERNEL_OK")
</pallas_src>

<mosaic_0001>
module attributes {stable_mosaic.version = 11 : i64} {
  func.func @_stats_kernel(%arg0: i32, %arg1: i32, %arg2: memref<1x4x512xf32, #tpu.memory_space<vmem>>, %arg3: memref<1x4x512xf32, #tpu.memory_space<vmem>>, %arg4: memref<8x4xf32, #tpu.memory_space<vmem>>, %arg5: memref<8x4xf32, #tpu.memory_space<vmem>>, %arg6: memref<1x8x2xf32, #tpu.memory_space<vmem>>) attributes {dimension_semantics = [#tpu.dimension_semantics<parallel>, #tpu.dimension_semantics<arbitrary>], iteration_bounds = array<i64: 2, 2>, scalar_prefetch = 0 : i64, scratch_operands = 0 : i64, tpu.core_type = #tpu.core_type<tc>, window_params = [{transform_indices = @transform_0, window_bounds = array<i64: 1, 4, 512>}, {transform_indices = @transform_1, window_bounds = array<i64: 1, 4, 512>}, {pipeline_mode = #tpu.pipeline_mode<synchronous>, transform_indices = @transform_2, window_bounds = array<i64: 8, 4>}, {pipeline_mode = #tpu.pipeline_mode<synchronous>, transform_indices = @transform_3, window_bounds = array<i64: 8, 4>}, {transform_indices = @transform_4, window_bounds = array<i64: 1, 8, 2>}]} {
    %c0_i32 = arith.constant 0 : i32
    %0 = arith.cmpi eq, %arg1, %c0_i32 : i32
    %1 = arith.extui %0 : i1 to i32
    %c0_i32_0 = arith.constant 0 : i32
    %2 = arith.cmpi ne, %1, %c0_i32_0 : i32
    scf.if %2 {
      %cst_24 = arith.constant 0.000000e+00 : f32
      %29 = vector.broadcast %cst_24 : f32 to vector<1x8x2xf32>
      %c0_25 = arith.constant 0 : index
      %c0_26 = arith.constant 0 : index
      %c0_27 = arith.constant 0 : index
      %30 = vector.load %arg6[%c0_25, %c0_26, %c0_27] : memref<1x8x2xf32, #tpu.memory_space<vmem>>, vector<1x8x2xf32>
      tpu.vector_store %arg6[%c0_25, %c0_26, %c0_27], %29 {strides = array<i32>} : memref<1x8x2xf32, #tpu.memory_space<vmem>>, vector<1x8x2xf32>,
    } else {
    }
    %c0 = arith.constant 0 : index
    %c0_1 = arith.constant 0 : index
    %c0_2 = arith.constant 0 : index
    %3 = vector.load %arg2[%c0, %c0_1, %c0_2] : memref<1x4x512xf32, #tpu.memory_space<vmem>>, vector<1x4x512xf32>
    %4 = vector.shape_cast %3 : vector<1x4x512xf32> to vector<4x512xf32>
    %c0_3 = arith.constant 0 : index
    %c0_4 = arith.constant 0 : index
    %c0_5 = arith.constant 0 : index
    %5 = vector.load %arg3[%c0_3, %c0_4, %c0_5] : memref<1x4x512xf32, #tpu.memory_space<vmem>>, vector<1x4x512xf32>
    %6 = vector.shape_cast %5 : vector<1x4x512xf32> to vector<4x512xf32>
    %c0_6 = arith.constant 0 : index
    %c0_7 = arith.constant 0 : index
    %7 = vector.load %arg4[%c0_6, %c0_7] : memref<8x4xf32, #tpu.memory_space<vmem>>, vector<8x4xf32>
    %cst = arith.constant dense<0.000000e+00> : vector<8x512xf32>
    %8 = tpu.matmul %7, %4, %cst {dimension_numbers = #tpu.dot_dimension_numbers<[1], [0], [0], [1], [0, 0, 1, 1], [], []>} : vector<8x4xf32>, vector<4x512xf32>, vector<8x512xf32> -> vector<8x512xf32>
    %c0_8 = arith.constant 0 : index
    %c0_9 = arith.constant 0 : index
    %9 = vector.load %arg5[%c0_8, %c0_9] : memref<8x4xf32, #tpu.memory_space<vmem>>, vector<8x4xf32>
    %cst_10 = arith.constant dense<0.000000e+00> : vector<8x512xf32>
    %10 = tpu.matmul %9, %6, %cst_10 {dimension_numbers = #tpu.dot_dimension_numbers<[1], [0], [0], [1], [0, 0, 1, 1], [], []>} : vector<8x4xf32>, vector<4x512xf32>, vector<8x512xf32> -> vector<8x512xf32>
    %11 = arith.addf %8, %10 : vector<8x512xf32>
    %cst_11 = arith.constant dense<0.000000e+00> : vector<8xf32>
    %12 = vector.multi_reduction <add>, %11, %cst_11 [1] : vector<8x512xf32> to vector<8xf32>
    %13 = vector.shape_cast %12 : vector<8xf32> to vector<8x1xf32>
    %14 = arith.mulf %11, %11 : vector<8x512xf32>
    %cst_12 = arith.constant dense<0.000000e+00> : vector<8xf32>
    %15 = vector.multi_reduction <add>, %14, %cst_12 [1] : vector<8x512xf32> to vector<8xf32>
    %16 = vector.shape_cast %15 : vector<8xf32> to vector<8x1xf32>
    %c0_13 = arith.constant 0 : index
    %c0_14 = arith.constant 0 : index
    %c0_15 = arith.constant 0 : index
    %17 = vector.load %arg6[%c0_13, %c0_14, %c0_15] : memref<1x8x2xf32, #tpu.memory_space<vmem>>, vector<1x8x1xf32>
    %18 = vector.shape_cast %17 : vector<1x8x1xf32> to vector<8x1xf32>
    %19 = arith.addf %18, %13 : vector<8x1xf32>
    %c0_16 = arith.constant 0 : index
    %c0_17 = arith.constant 0 : index
    %c0_18 = arith.constant 0 : index
    %20 = vector.load %arg6[%c0_16, %c0_17, %c0_18] : memref<1x8x2xf32, #tpu.memory_space<vmem>>, vector<1x8x1xf32>
    %21 = vector.shape_cast %20 : vector<1x8x1xf32> to vector<8x1xf32>
    %22 = vector.shape_cast %19 : vector<8x1xf32> to vector<1x8x1xf32>
    tpu.vector_store %arg6[%c0_16, %c0_17, %c0_18], %22 {strides = array<i32>} : memref<1x8x2xf32, #tpu.memory_space<vmem>>, vector<1x8x1xf32>,
    %c0_19 = arith.constant 0 : index
    %c0_20 = arith.constant 0 : index
    %c1 = arith.constant 1 : index
    %23 = vector.load %arg6[%c0_19, %c0_20, %c1] : memref<1x8x2xf32, #tpu.memory_space<vmem>>, vector<1x8x1xf32>
    %24 = vector.shape_cast %23 : vector<1x8x1xf32> to vector<8x1xf32>
    %25 = arith.addf %24, %16 : vector<8x1xf32>
    %c0_21 = arith.constant 0 : index
    %c0_22 = arith.constant 0 : index
    %c1_23 = arith.constant 1 : index
    %26 = vector.load %arg6[%c0_21, %c0_22, %c1_23] : memref<1x8x2xf32, #tpu.memory_space<vmem>>, vector<1x8x1xf32>
    %27 = vector.shape_cast %26 : vector<1x8x1xf32> to vector<8x1xf32>
    %28 = vector.shape_cast %25 : vector<8x1xf32> to vector<1x8x1xf32>
    tpu.vector_store %arg6[%c0_21, %c0_22, %c1_23], %28 {strides = array<i32>} : memref<1x8x2xf32, #tpu.memory_space<vmem>>, vector<1x8x1xf32>,
    return
  }
  func.func @transform_0(%arg0: i32, %arg1: i32) -> (i32, i32, i32) {
    %c0_i32 = arith.constant 0 : i32
    %c0_i32_0 = arith.constant 0 : i32
    return %arg0, %c0_i32, %arg1 : i32, i32, i32
  }
  func.func @transform_1(%arg0: i32, %arg1: i32) -> (i32, i32, i32) {
    %c0_i32 = arith.constant 0 : i32
    %c0_i32_0 = arith.constant 0 : i32
    return %arg0, %c0_i32, %arg1 : i32, i32, i32
  }
  func.func @transform_2(%arg0: i32, %arg1: i32) -> (i32, i32) {
    %c0_i32 = arith.constant 0 : i32
    %c0_i32_0 = arith.constant 0 : i32
    %c0_i32_1 = arith.constant 0 : i32
    return %c0_i32, %c0_i32_0 : i32, i32
  }
  func.func @transform_3(%arg0: i32, %arg1: i32) -> (i32, i32) {
    %c0_i32 = arith.constant 0 : i32
    %c0_i32_0 = arith.constant 0 : i32
    %c0_i32_1 = arith.constant 0 : i32
    return %c0_i32, %c0_i32_0 : i32, i32
  }
  func.func @transform_4(%arg0: i32, %arg1: i32) -> (i32, i32, i32) {
    %c0_i32 = arith.constant 0 : i32
    %c0_i32_0 = arith.constant 0 : i32
    %c0_i32_1 = arith.constant 0 : i32
    return %arg0, %c0_i32, %c0_i32_0 : i32, i32, i32
  }
}

</mosaic_0001>

<llo_original>
// kernel: tpu_custom_call.1
$region0: #{tpu_custom_call.1}
  #allocation0 [shape = 'u32[]', space=smem, size = 0x4, offset = 0x4, fixed_abs, tag = 'smem constant byte address 0x4 - core index']
  #allocation1 [shape = 'u32[72,128]{1,0:T(1,128)}', space=vmem, size = 0x9000, scoped, tag = 'internal scratch']
  %s0 = inlined_call_operand.hbm [shape: f32[2,4,1024], index: 0, kind: input, shape index: {}]
  %s1 = inlined_call_operand.hbm [shape: f32[2,4,1024], index: 1, kind: input, shape index: {}]
  %s2 = inlined_call_operand.vmem [shape: f32[8,4], index: 2, kind: input, shape index: {}]
  %s3 = inlined_call_operand.vmem [shape: f32[8,4], index: 3, kind: input, shape index: {}]
  %s4 = inlined_call_operand.vmem [shape: f32[2,8,2], index: 4, kind: output, shape index: {}]
  %s5 = sld [smem:[#allocation0]]
  $region61: #{tpu_custom_call.1} parent=0
    _
  %s7 = ssub.s32 1, %s5
  %s8 = scalar_select 0, %s7, %s5
  $region1: #{tpu_custom_call.1} parent=0
    #allocation2 [shape = 'u8[16384]{0}', space=vmem, size = 0x4000, scoped, tag = 'input window, operand 0']
    #allocation3 [shape = 's32[2]{0}', space=sflag, size = 0x8, scoped, tag = 'scoped memory for tpu_custom_call.1']
    #allocation4 [shape = 'u8[16384]{0}', space=vmem, size = 0x4000, scoped, tag = 'input window, operand 1']
    #allocation5 [shape = 's32[2]{0}', space=sflag, size = 0x8, scoped, tag = 'scoped memory for tpu_custom_call.1']
    %9 = vsyncpa [#allocation3], 0
    %s10 = scalar_lea.sflag [#allocation3], 1
    %11 = vsyncpa %s10, 0
    %12 = vsyncpa [#allocation5], 0
    %s13 = scalar_lea.sflag [#allocation5], 1
    %14 = vsyncpa %s13, 0
    loop: start=0, step=1, limit=6
    $region2: #{tpu_custom_call.1} parent=1 // loop_pre_header
      _
    $region3: #{tpu_custom_call.1} parent=1 // loop_header
      %s16 = sphi 0, %s20
      %p17 = scmp.ge.s32.totalorder %s16, 6
      %s23 = sphi 0, %s35
      %s24 = sphi 0, %s31
      %s25 = sphi 0, %s23
      %s26 = sphi 0, %s24
      %s27 = sphi 0, %s25
      %s28 = sphi 0, %s26
      %s40 = sphi 0, %s42
      %s43 = sphi 0, %s40
      %s44 = sphi 0, %s43
      %s60 = sphi 0, %s44
      %s68 = sphi 0, %s70
      %s71 = sphi 0, %s68
      %s72 = sphi 0, %s71
      %s88 = sphi 0, %s72
      %s92 = sphi 0, %s92
      %s94 = sphi 0, %s92
      %s95 = sphi 0, %s94
      %s109 = sphi 0, %s95
      %s113 = sphi 0, %s113
      %s115 = sphi 0, %s113
      %s116 = sphi 0, %s115
      %s130 = sphi 0, %s116
      %s136 = sphi 0, %s138
      %s139 = sphi 0, %s136
      %s140 = sphi 0, %s139
      %s156 = sphi 0, %s140
    $region4: #{tpu_custom_call.1} parent=1 // loop_header_branch
      %19 = sbr.rel (%p17) target = $region8
    $region5: #{tpu_custom_call.1} parent=1 // loop_body
      %s21 = ssub.s32 %s16, 1
      %s22 = ssub.s32 %s16, 2
      %s29 = sadd.s32 1, %s24
      %p30 = scmp.ge.s32.totalorder %s29, 2
      %s31 = scalar_select %p30, 0, %s29
      %s32 = sadd.s32 1, %s23
      %s33 = scalar_select %p30, %s32, %s23
      %p34 = scmp.ge.s32.totalorder %s33, 2
      %s35 = scalar_select %p34, 0, %s33
      %s36 = ssub.s32 %s23, %s35
      %s37 = ssub.s32 %s24, %s31
      %s38 = sor.u32 %s36, %s37
      %p39 = scmp.eq.s32.totalorder %s38, 0
      %s41 = sadd.s32 %s40, 1
      %s42 = scalar_select %p39, %s40, %s41
      %p45 = pneg %p39
      %p46 = scmp.eq.s32.totalorder %s16, 3
      %p47 = por %p45, %p46
      %p48 = scmp.ne.s32.totalorder %s40, %s43
      %p49 = scmp.eq.s32.totalorder %s16, 0
      %p50 = por %p48, %p49
      %p51 = scmp.ne.s32.totalorder %s40, %s43
      %p52 = scmp.eq.s32.totalorder %s21, 3
      %p53 = por %p51, %p52
      %p54 = scmp.ne.s32.totalorder %s43, %s44
      %p55 = scmp.eq.s32.totalorder %s21, 0
      %p56 = por %p54, %p55
      %p57 = scmp.ne.s32.totalorder %s43, %s44
      %p58 = scmp.eq.s32.totalorder %s22, 3
      %p59 = por %p57, %p58
      %p61 = scmp.ne.s32.totalorder %s44, %s60
      %p62 = scmp.eq.s32.totalorder %s22, 0
      %p63 = por %p61, %p62
      %s64 = ssub.s32 %s23, %s35
      %s65 = ssub.s32 %s24, %s31
      %s66 = sor.u32 %s64, %s65
      %p67 = scmp.eq.s32.totalorder %s66, 0
      %s69 = sadd.s32 %s68, 1
      %s70 = scalar_select %p67, %s68, %s69
      %p73 = pneg %p67
      %p74 = scmp.eq.s32.totalorder %s16, 3
      %p75 = por %p73, %p74
      %p76 = scmp.ne.s32.totalorder %s68, %s71
      %p77 = scmp.eq.s32.totalorder %s16, 0
      %p78 = por %p76, %p77
      %p79 = scmp.ne.s32.totalorder %s68, %s71
      %p80 = scmp.eq.s32.totalorder %s21, 3
      %p81 = por %p79, %p80
      %p82 = scmp.ne.s32.totalorder %s71, %s72
      %p83 = scmp.eq.s32.totalorder %s21, 0
      %p84 = por %p82, %p83
      %p85 = scmp.ne.s32.totalorder %s71, %s72
      %p86 = scmp.eq.s32.totalorder %s22, 3
      %p87 = por %p85, %p86
      %p89 = scmp.ne.s32.totalorder %s72, %s88
      %p90 = scmp.eq.s32.totalorder %s22, 0
      %p91 = por %p89, %p90
      %s93 = sadd.s32 %s92, 1
      %p96 = scmp.eq.s32.totalorder %s16, 3
      %p97 = scmp.ne.s32.totalorder %s92, %s94
      %p98 = scmp.eq.s32.totalorder %s16, 0
      %p99 = por %p97, %p98
      %p100 = scmp.ne.s32.totalorder %s92, %s94
      %p101 = scmp.eq.s32.totalorder %s21, 3
      %p102 = por %p100, %p101
      %p103 = scmp.ne.s32.totalorder %s94, %s95
      %p104 = scmp.eq.s32.totalorder %s21, 0
      %p105 = por %p103, %p104
      %p106 = scmp.ne.s32.totalorder %s94, %s95
      %p107 = scmp.eq.s32.totalorder %s22, 3
      %p108 = por %p106, %p107
      %p110 = scmp.ne.s32.totalorder %s95, %s109
      %p111 = scmp.eq.s32.totalorder %s22, 0
      %p112 = por %p110, %p111
      %s114 = sadd.s32 %s113, 1
      %p117 = scmp.eq.s32.totalorder %s16, 3
      %p118 = scmp.ne.s32.totalorder %s113, %s115
      %p119 = scmp.eq.s32.totalorder %s16, 0
      %p120 = por %p118, %p119
      %p121 = scmp.ne.s32.totalorder %s113, %s115
      %p122 = scmp.eq.s32.totalorder %s21, 3
      %p123 = por %p121, %p122
      %p124 = scmp.ne.s32.totalorder %s115, %s116
      %p125 = scmp.eq.s32.totalorder %s21, 0
      %p126 = por %p124, %p125
      %p127 = scmp.ne.s32.totalorder %s115, %s116
      %p128 = scmp.eq.s32.totalorder %s22, 3
      %p129 = por %p127, %p128
      %p131 = scmp.ne.s32.totalorder %s116, %s130
      %p132 = scmp.eq.s32.totalorder %s22, 0
      %p133 = por %p131, %p132
      %s134 = ssub.s32 %s23, %s35
      %p135 = scmp.eq.s32.totalorder %s134, 0
      %s137 = sadd.s32 %s136, 1
      %s138 = scalar_select %p135, %s136, %s137
      %p141 = pneg %p135
      %p142 = scmp.eq.s32.totalorder %s16, 3
      %p143 = por %p141, %p142
      %p144 = scmp.ne.s32.totalorder %s136, %s139
      %p145 = scmp.eq.s32.totalorder %s16, 0
      %p146 = por %p144, %p145
      %p147 = scmp.ne.s32.totalorder %s136, %s139
      %p148 = scmp.eq.s32.totalorder %s21, 3
      %p149 = por %p147, %p148
      %p150 = scmp.ne.s32.totalorder %s139, %s140
      %p151 = scmp.eq.s32.totalorder %s21, 0
      %p152 = por %p150, %p151
      %p153 = scmp.ne.s32.totalorder %s139, %s140
      %p154 = scmp.eq.s32.totalorder %s22, 3
      %p155 = por %p153, %p154
      %p157 = scmp.ne.s32.totalorder %s140, %s156
      %p158 = scmp.eq.s32.totalorder %s22, 0
      %p159 = por %p157, %p158
      %p160 = scmp.le.s32.totalorder 1, %s16
      %p161 = scmp.lt.s32.totalorder %s16, 5
      %p162 = pnand %p160, %p161
      %p163 = pneg %p162
      // Predicated region
      $region9: #{tpu_custom_call.1} parent=5 // pred_check
        _
      $region10: #{tpu_custom_call.1} parent=5 // pred_check_branch
        %165 = sbr.rel (%p162) target = $region12
      $region11: #{tpu_custom_call.1} parent=5 // pred_region
        %s166 = ssub.s32 %s16, 1
        // Predicated region
        $region13: #{tpu_custom_call.1} parent=11 // pred_check
          %p167 = pneg %p105
        $region14: #{tpu_custom_call.1} parent=11 // pred_check_branch
          %169 = sbr.rel (%p167) target = $region16
        $region15: #{tpu_custom_call.1} parent=11 // pred_region
          _
        $region16: #{tpu_custom_call.1} parent=11 // pred_fallthru
          _
        // Predicated region
        $region17: #{tpu_custom_call.1} parent=11 // pred_check
          %p170 = pneg %p126
        $region18: #{tpu_custom_call.1} parent=11 // pred_check_branch
          %172 = sbr.rel (%p170) target = $region20
        $region19: #{tpu_custom_call.1} parent=11 // pred_region
          _
        $region20: #{tpu_custom_call.1} parent=11 // pred_fallthru
          _
      $region12: #{tpu_custom_call.1} parent=5 // pred_fallthru
        _
      %p173 = scmp.lt.s32.totalorder %s16, 4
      // Predicated region
      $region21: #{tpu_custom_call.1} parent=5 // pred_check
        %p174 = pneg %p173
      $region22: #{tpu_custom_call.1} parent=5 // pred_check_branch
        %176 = sbr.rel (%p174) target = $region24
      $region23: #{tpu_custom_call.1} parent=5 // pred_region
        // Predicated region
        $region25: #{tpu_custom_call.1} parent=23 // pred_check
          %p177 = pneg %p50
        $region26: #{tpu_custom_call.1} parent=23 // pred_check_branch
          %179 = sbr.rel (%p177) target = $region28
        $region27: #{tpu_custom_call.1} parent=23 // pred_region
          %s180 = sand.u32 %s40, 1
          %s181 = scalar_lea.sflag [#allocation3], %s180
          %s182 = sand.u32 %s40, 1
          %s183 = smul.addr %s182, 16
          %s184 = scalar_lea.vmem [#allocation2], %s183
          %s185 = smul.u32 4, %s24
          %187 = vsyncadd %s181, 0
          %s188 = smul.addr %s23, 8
          %s189 = sadd.s32 %s185, %s188
          %s190 = smul.addr %s189, 4
          %s191 = scalar_lea.hbm %s0, %s190
          %s193 = sshll.u32 %s191, 4
          %s194 = int_to_ptr.hbm [resolvable:$true] %s193
          %s195 = sshll.u32 %s184, 4
          %s196 = int_to_ptr.vmem [resolvable:$true] %s195
          %198 = dma.hbm_to_vmem [thread:$0]  %s194, 256, %s196, %s181
        $region28: #{tpu_custom_call.1} parent=23 // pred_fallthru
          _
        // Predicated region
        $region29: #{tpu_custom_call.1} parent=23 // pred_check
          %p199 = pneg %p78
        $region30: #{tpu_custom_call.1} parent=23 // pred_check_branch
          %201 = sbr.rel (%p199) target = $region32
        $region31: #{tpu_custom_call.1} parent=23 // pred_region
          %s202 = sand.u32 %s68, 1
          %s203 = scalar_lea.sflag [#allocation5], %s202
          %s204 = sand.u32 %s68, 1
          %s205 = smul.addr %s204, 16
          %s206 = scalar_lea.vmem [#allocation4], %s205
          %s207 = smul.u32 4, %s24
          %209 = vsyncadd %s203, 0
          %s210 = smul.addr %s23, 8
          %s211 = sadd.s32 %s207, %s210
          %s212 = smul.addr %s211, 4
          %s213 = scalar_lea.hbm %s1, %s212
          %s215 = sshll.u32 %s213, 4
          %s216 = int_to_ptr.hbm [resolvable:$true] %s215
          %s217 = sshll.u32 %s206, 4
          %s218 = int_to_ptr.vmem [resolvable:$true] %s217
          %220 = dma.hbm_to_vmem [thread:$0]  %s216, 256, %s218, %s203
        $region32: #{tpu_custom_call.1} parent=23 // pred_fallthru
          _
      $region24: #{tpu_custom_call.1} parent=5 // pred_fallthru
        _
      %p221 = scmp.le.s32.totalorder 1, %s16
      %p222 = scmp.lt.s32.totalorder %s16, 5
      %p223 = pnand %p221, %p222
      %p224 = pneg %p223
      // Predicated region
      $region33: #{tpu_custom_call.1} parent=5 // pred_check
        _
      $region34: #{tpu_custom_call.1} parent=5 // pred_check_branch
        %226 = sbr.rel (%p223) target = $region36
      $region35: #{tpu_custom_call.1} parent=5 // pred_region
        %s227 = ssub.s32 %s16, 1
        %s228 = sand.u32 %s43, 1
        %s229 = scalar_lea.sflag [#allocation3], %s228
        %s230 = sand.u32 %s43, 1
        %s231 = smul.addr %s230, 16
        %s232 = scalar_lea.vmem [#allocation2], %s231
        // Predicated region
        $region37: #{tpu_custom_call.1} parent=35 // pred_check
          %p233 = pneg %p56
        $region38: #{tpu_custom_call.1} parent=35 // pred_check_branch
          %235 = sbr.rel (%p233) target = $region40
        $region39: #{tpu_custom_call.1} parent=35 // pred_region
          %237 = dma.done %s229, 256
        $region40: #{tpu_custom_call.1} parent=35 // pred_fallthru
          _
        %s238 = sand.u32 %s71, 1
        %s239 = scalar_lea.sflag [#allocation5], %s238
        %s240 = sand.u32 %s71, 1
        %s241 = smul.addr %s240, 16
        %s242 = scalar_lea.vmem [#allocation4], %s241
        // Predicated region
        $region41: #{tpu_custom_call.1} parent=35 // pred_check
          %p243 = pneg %p84
        $region42: #{tpu_custom_call.1} parent=35 // pred_check_branch
          %245 = sbr.rel (%p243) target = $region44
        $region43: #{tpu_custom_call.1} parent=35 // pred_region
          %247 = dma.done %s239, 256
        $region44: #{tpu_custom_call.1} parent=35 // pred_fallthru
          _
        %s248 = sand.u32 %s43, 1
        %s249 = scalar_lea.sflag [#allocation3], %s248
        %s250 = sand.u32 %s43, 1
        %s251 = smul.addr %s250, 16
        %s252 = scalar_lea.vmem [#allocation2], %s251
        %p253 = pneg %p56
        %p254 = pneg %p53
        %s255 = sand.u32 %s71, 1
        %s256 = scalar_lea.sflag [#allocation5], %s255
        %s257 = sand.u32 %s71, 1
        %s258 = smul.addr %s257, 16
        %s259 = scalar_lea.vmem [#allocation4], %s258
        %p260 = pneg %p84
        %p261 = pneg %p81
        %p262 = pneg %p105
        %p263 = pneg %p102
        %p264 = pneg %p126
        %p265 = pneg %p123
        %p266 = pneg %p152
        %p267 = pneg %p149
        %p268 = scmp.lt.s32.totalorder %s25, 1
        %s269 = scalar_select %p268, %s25, 1
        %s270 = smul.addr %s269, 8
        %s271 = scalar_lea.vmem %s4, %s270
        %s272 = smul.u32 4, %s26
        %s273 = smul.u32 4, %s26
        %p274 = scmp.lt.s32.totalorder %s25, 1
        %s275 = scalar_select %p274, %s25, 1
        %s276 = smul.addr %s275, 8
        %s277 = scalar_lea.vmem %s4, %s276
        %p278 = scmp.eq.s32.totalorder %s26, 0
        // Predicated region
        $region45: #{tpu_custom_call.1} parent=35 // pred_check
          %p279 = pneg %p278
        $region46: #{tpu_custom_call.1} parent=35 // pred_check_branch
          %281 = sbr.rel (%p279) target = $region48
        $region47: #{tpu_custom_call.1} parent=35 // pred_region
          %vm282 = vcmask 15360
          %283 = vst.msk [vmem:[%s277] sm:$0xff] %vm282, 0.0
        $region48: #{tpu_custom_call.1} parent=35 // pred_fallthru
          _
        %v284 = vld [vmem:[%s232] sm:$0xff]
        %v285 = vld [vmem:[%s232 + $0x8] sm:$0xff]
        %v286 = vld [vmem:[%s242] sm:$0xff]
        %v287 = vld [vmem:[%s242 + $0x8] sm:$0xff]
        %v288 = vld [vmem:[%s2] sm:$0xff]
        %v289 = vld [vmem:[%s3] sm:$0xff]
        %292 = vst [vmem:[#allocation1] ss:$2 sm:$0xff] %v286
        %s293 = scalar_lea.vmem [#allocation1], 16
        %294 = vst [vmem:[%s293] ss:$2 sm:$0xff] %v287
        %v295 = vld.sshfl [vmem:[#allocation1] sm:$0xff pattern:$0x75316420]
        %v296 = vld.sshfl [vmem:[#allocation1 + $0x8] sm:$0xff pattern:$0x75316420]
        %v297 = vld.sshfl [vmem:[#allocation1 + $0x10] sm:$0xff pattern:$0x75316420]
        %v298 = vld.sshfl [vmem:[#allocation1 + $0x18] sm:$0xff pattern:$0x75316420]
        %vm299 = vcmask 31744
        %v301 = vsel %vm299, %v289, 0
        %vm303 = vcmask 1043456
        %v304 = vsel %vm303, %v295, 0
        %v306 = vsel %vm303, %v296, 0
        %v308 = vsel %vm303, %v297, 0
        %v310 = vsel %vm303, %v298, 0
        %312 = vmatpush.msra.mxu0 0.0
        %313 = vmatpush.msra.mxu0 0.0
        %314 = vmatpush.msra.mxu0 0.0
        %315 = vmatpush.msra.mxu0 0.0
        %316 = vmatpush.msra.mxu0 0.0
        %317 = vmatpush.msra.mxu0 0.0
        %318 = vmatpush.msra.mxu0 0.0
        %319 = vmatpush.msra.mxu0 0.0
        %320 = vmatpush.msra.mxu0 0.0
        %321 = vmatpush.msra.mxu0 0.0
        %322 = vmatpush.msra.mxu0 0.0
        %323 = vmatpush.msra.mxu0 0.0
        %324 = vmatpush.msra.mxu0 0.0
        %325 = vmatpush.msra.mxu0 0.0
        %326 = vmatpush.msra.mxu0 0.0
        %327 = vmatpush.msra.mxu0 %v304
        %328 = vmatmul.f32.gmra.mxu0 %v301
        %v329 = vpop.f32.mrf.mxu0
        %v330 = vadd.f32 0.0, %v329
        %331 = vdwg.mxu0
        %332 = vmatpush.msra.mxu0 0.0
        %333 = vmatpush.msra.mxu0 0.0
        %334 = vmatpush.msra.mxu0 0.0
        %335 = vmatpush.msra.mxu0 0.0
        %336 = vmatpush.msra.mxu0 0.0
        %337 = vmatpush.msra.mxu0 0.0
        %338 = vmatpush.msra.mxu0 0.0
        %339 = vmatpush.msra.mxu0 0.0
        %340 = vmatpush.msra.mxu0 0.0
        %341 = vmatpush.msra.mxu0 0.0
        %342 = vmatpush.msra.mxu0 0.0
        %343 = vmatpush.msra.mxu0 0.0
        %344 = vmatpush.msra.mxu0 0.0
        %345 = vmatpush.msra.mxu0 0.0
        %346 = vmatpush.msra.mxu0 0.0
        %347 = vmatpush.msra.mxu0 %v306
        %348 = vmatmul.f32.gmra.mxu0 %v301
        %v349 = vpop.f32.mrf.mxu0
        %v350 = vadd.f32 0.0, %v349
        %351 = vdwg.mxu0
        %352 = vmatpush.msra.mxu0 0.0
        %353 = vmatpush.msra.mxu0 0.0
        %354 = vmatpush.msra.mxu0 0.0
        %355 = vmatpush.msra.mxu0 0.0
        %356 = vmatpush.msra.mxu0 0.0
        %357 = vmatpush.msra.mxu0 0.0
        %358 = vmatpush.msra.mxu0 0.0
        %359 = vmatpush.msra.mxu0 0.0
        %360 = vmatpush.msra.mxu0 0.0
        %361 = vmatpush.msra.mxu0 0.0
        %362 = vmatpush.msra.mxu0 0.0
        %363 = vmatpush.msra.mxu0 0.0
        %364 = vmatpush.msra.mxu0 0.0
        %365 = vmatpush.msra.mxu0 0.0
        %366 = vmatpush.msra.mxu0 0.0
        %367 = vmatpush.msra.mxu0 %v308
        %368 = vmatmul.f32.gmra.mxu0 %v301
        %v369 = vpop.f32.mrf.mxu0
        %v370 = vadd.f32 0.0, %v369
        %371 = vdwg.mxu0
        %372 = vmatpush.msra.mxu0 0.0
        %373 = vmatpush.msra.mxu0 0.0
        %374 = vmatpush.msra.mxu0 0.0
        %375 = vmatpush.msra.mxu0 0.0
        %376 = vmatpush.msra.mxu0 0.0
        %377 = vmatpush.msra.mxu0 0.0
        %378 = vmatpush.msra.mxu0 0.0
        %379 = vmatpush.msra.mxu0 0.0
        %380 = vmatpush.msra.mxu0 0.0
        %381 = vmatpush.msra.mxu0 0.0
        %382 = vmatpush.msra.mxu0 0.0
        %383 = vmatpush.msra.mxu0 0.0
        %384 = vmatpush.msra.mxu0 0.0
        %385 = vmatpush.msra.mxu0 0.0
        %386 = vmatpush.msra.mxu0 0.0
        %387 = vmatpush.msra.mxu0 %v310
        %388 = vmatmul.f32.gmra.mxu0 %v301
        %v389 = vpop.f32.mrf.mxu0
        %v390 = vadd.f32 0.0, %v389
        %391 = vdwg.mxu0
        %394 = vst [vmem:[#allocation1] ss:$2 sm:$0xff] %v284
        %s395 = scalar_lea.vmem [#allocation1], 16
        %396 = vst [vmem:[%s395] ss:$2 sm:$0xff] %v285
        %v397 = vld.sshfl [vmem:[#allocation1] sm:$0xff pattern:$0x75316420]
        %v398 = vld.sshfl [vmem:[#allocation1 + $0x8] sm:$0xff pattern:$0x75316420]
        %v399 = vld.sshfl [vmem:[#allocation1 + $0x10] sm:$0xff pattern:$0x75316420]
        %v400 = vld.sshfl [vmem:[#allocation1 + $0x18] sm:$0xff pattern:$0x75316420]
        %v402 = vsel %vm299, %v288, 0
        %v404 = vsel %vm303, %v397, 0
        %v406 = vsel %vm303, %v398, 0
        %v408 = vsel %vm303, %v399, 0
        %v410 = vsel %vm303, %v400, 0
        %412 = vmatpush.msra.mxu0 0.0
        %413 = vmatpush.msra.mxu0 0.0
        %414 = vmatpush.msra.mxu0 0.0
        %415 = vmatpush.msra.mxu0 0.0
        %416 = vmatpush.msra.mxu0 0.0
        %417 = vmatpush.msra.mxu0 0.0
        %418 = vmatpush.msra.mxu0 0.0
        %419 = vmatpush.msra.mxu0 0.0
        %420 = vmatpush.msra.mxu0 0.0
        %421 = vmatpush.msra.mxu0 0.0
        %422 = vmatpush.msra.mxu0 0.0
        %423 = vmatpush.msra.mxu0 0.0
        %424 = vmatpush.msra.mxu0 0.0
        %425 = vmatpush.msra.mxu0 0.0
        %426 = vmatpush.msra.mxu0 0.0
        %427 = vmatpush.msra.mxu0 %v404
        %428 = vmatmul.f32.gmra.mxu0 %v402
        %v429 = vpop.f32.mrf.mxu0
        %v430 = vadd.f32 %v330, %v429
        %431 = vdwg.mxu0
        %432 = vmatpush.msra.mxu0 0.0
        %433 = vmatpush.msra.mxu0 0.0
        %434 = vmatpush.msra.mxu0 0.0
        %435 = vmatpush.msra.mxu0 0.0
        %436 = vmatpush.msra.mxu0 0.0
        %437 = vmatpush.msra.mxu0 0.0
        %438 = vmatpush.msra.mxu0 0.0
        %439 = vmatpush.msra.mxu0 0.0
        %440 = vmatpush.msra.mxu0 0.0
        %441 = vmatpush.msra.mxu0 0.0
        %442 = vmatpush.msra.mxu0 0.0
        %443 = vmatpush.msra.mxu0 0.0
        %444 = vmatpush.msra.mxu0 0.0
        %445 = vmatpush.msra.mxu0 0.0
        %446 = vmatpush.msra.mxu0 0.0
        %447 = vmatpush.msra.mxu0 %v406
        %448 = vmatmul.f32.gmra.mxu0 %v402
        %v449 = vpop.f32.mrf.mxu0
        %v450 = vadd.f32 %v350, %v449
        %451 = vdwg.mxu0
        %452 = vmatpush.msra.mxu0 0.0
        %453 = vmatpush.msra.mxu0 0.0
        %454 = vmatpush.msra.mxu0 0.0
        %455 = vmatpush.msra.mxu0 0.0
        %456 = vmatpush.msra.mxu0 0.0
        %457 = vmatpush.msra.mxu0 0.0
        %458 = vmatpush.msra.mxu0 0.0
        %459 = vmatpush.msra.mxu0 0.0
        %460 = vmatpush.msra.mxu0 0.0
        %461 = vmatpush.msra.mxu0 0.0
        %462 = vmatpush.msra.mxu0 0.0
        %463 = vmatpush.msra.mxu0 0.0
        %464 = vmatpush.msra.mxu0 0.0
        %465 = vmatpush.msra.mxu0 0.0
        %466 = vmatpush.msra.mxu0 0.0
        %467 = vmatpush.msra.mxu0 %v408
        %468 = vmatmul.f32.gmra.mxu0 %v402
        %v469 = vpop.f32.mrf.mxu0
        %v470 = vadd.f32 %v370, %v469
        %471 = vdwg.mxu0
        %472 = vmatpush.msra.mxu0 0.0
        %473 = vmatpush.msra.mxu0 0.0
        %474 = vmatpush.msra.mxu0 0.0
        %475 = vmatpush.msra.mxu0 0.0
        %476 = vmatpush.msra.mxu0 0.0
        %477 = vmatpush.msra.mxu0 0.0
        %478 = vmatpush.msra.mxu0 0.0
        %479 = vmatpush.msra.mxu0 0.0
        %480 = vmatpush.msra.mxu0 0.0
        %481 = vmatpush.msra.mxu0 0.0
        %482 = vmatpush.msra.mxu0 0.0
        %483 = vmatpush.msra.mxu0 0.0
        %484 = vmatpush.msra.mxu0 0.0
        %485 = vmatpush.msra.mxu0 0.0
        %486 = vmatpush.msra.mxu0 0.0
        %487 = vmatpush.msra.mxu0 %v410
        %488 = vmatmul.f32.gmra.mxu0 %v402
        %v489 = vpop.f32.mrf.mxu0
        %v490 = vadd.f32 %v390, %v489
        %491 = vdwg.mxu0
        %v492 = vadd.f32 %v430, %v450
        %v493 = vadd.f32 %v492, %v470
        %v494 = vadd.f32 %v493, %v490
        %495 = vadd.xlane.f32.xlu0 %v494
        %v496 = vpop.xlane.xlu0 %495
        %v497 = vmul.f32 %v430, %v430
        %v498 = vmul.f32 %v450, %v450
        %v499 = vmul.f32 %v470, %v470
        %v500 = vmul.f32 %v490, %v490
        %v501 = vadd.f32 %v497, %v498
        %v502 = vadd.f32 %v501, %v499
        %v503 = vadd.f32 %v502, %v500
        %504 = vadd.xlane.f32.xlu0 %v503
        %v505 = vpop.xlane.xlu0 %504
        %v506 = vld [vmem:[%s277] sm:$0xff]
        %v507 = vadd.f32 %v506, %v496
        %vm508 = vcmask 7168
        %509 = vst.msk [vmem:[%s277] sm:$0xff] %vm508, %v507
        %v510 = vld [vmem:[%s277] sm:$0xff]
        %v511 = vadd.f32 %v510, %v505
        %vm512 = vcmask 15368
        %513 = vst.msk [vmem:[%s277] sm:$0xff] %vm512, %v511
        %p514 = scmp.lt.s32.totalorder %s25, 1
        %s515 = scalar_select %p514, %s25, 1
        %s516 = smul.addr %s515, 8
        %s517 = scalar_lea.vmem %s4, %s516
        // Predicated region
        $region49: #{tpu_custom_call.1} parent=35 // pred_check
          %p518 = pneg %p149
        $region50: #{tpu_custom_call.1} parent=35 // pred_check_branch
          %520 = sbr.rel (%p518) target = $region52
        $region51: #{tpu_custom_call.1} parent=35 // pred_region
          _
        $region52: #{tpu_custom_call.1} parent=35 // pred_fallthru
          _
      $region36: #{tpu_custom_call.1} parent=5 // pred_fallthru
        _
      %p521 = scmp.le.s32.totalorder 2, %s16
      // Predicated region
      $region53: #{tpu_custom_call.1} parent=5 // pred_check
        %p522 = pneg %p521
      $region54: #{tpu_custom_call.1} parent=5 // pred_check_branch
        %524 = sbr.rel (%p522) target = $region56
      $region55: #{tpu_custom_call.1} parent=5 // pred_region
        %s525 = ssub.s32 %s16, 2
        // Predicated region
        $region57: #{tpu_custom_call.1} parent=55 // pred_check
          %p526 = pneg %p155
        $region58: #{tpu_custom_call.1} parent=55 // pred_check_branch
          %528 = sbr.rel (%p526) target = $region60
        $region59: #{tpu_custom_call.1} parent=55 // pred_region
          %p529 = scmp.lt.s32.totalorder %s27, 1
          %s530 = scalar_select %p529, %s27, 1
          %s531 = smul.addr %s530, 8
          %s532 = scalar_lea.vmem %s4, %s531
        $region60: #{tpu_custom_call.1} parent=55 // pred_fallthru
          _
      $region56: #{tpu_custom_call.1} parent=5 // pred_fallthru
        _
    $region6: #{tpu_custom_call.1} parent=1 // loop_footer
      %s20 = sadd.s32 1, %s16
    $region7: #{tpu_custom_call.1} parent=1 // loop_footer_branch
      %15 = sbr.rel target = $region3
    $region8: #{tpu_custom_call.1} parent=1 // loop_exit
      _
    %533 = vsyncpa [#allocation3], 1
    %s534 = scalar_lea.sflag [#allocation3], 1
    %535 = vsyncpa %s534, 1
    %536 = vsyncpa [#allocation5], 1
    %s537 = scalar_lea.sflag [#allocation5], 1
    %538 = vsyncpa %s537, 1

</llo_original>
